<compile_context>
chip_gen: v6e
topology: v6e:2x2x1
jax: 0.10.0
libtpu: 0.0.40
codegen_flags: <defaults>
</compile_context>

<pallas_src>
import functools

import jax
import jax.numpy as jnp
from jax.experimental import pallas as pl
from jax.experimental.pallas import tpu as pltpu

LANE = 128     # TPU lane width (last dim)
SUBLANE = 8    # TPU sublane width (second-to-last dim)


def _round_up(x, m):
    return (x + m - 1) // m * m


def _tensorcores_per_chip():
    """Best-effort TensorCore count (v7x has 2).  Falls back to 2: splitting the
    batch into two tiles is harmless (~0.35us) on single-TC chips."""
    try:
        info = pltpu.get_tpu_info()
        for attr in ("num_cores", "core_count", "num_tensorcores", "cores_per_chip"):
            v = getattr(info, attr, None)
            if v:
                return int(v)
    except Exception:
        pass
    return 2


def _batch_tiling(B, min_tiles):
    """Pick a batch tile so padding never balloons: TB ~= ceil(B/n_tiles) rounded
    up to a sublane multiple, n_tiles large enough that no tile exceeds 512 rows
    and (for multi-TC chips) the grid spans all TensorCores."""
    n_tiles = max(min_tiles, pl.cdiv(B, 512))
    TB = _round_up(pl.cdiv(B, n_tiles), SUBLANE)
    n_tiles = pl.cdiv(B, TB)
    Bp = n_tiles * TB
    return TB, Bp, n_tiles


def _sblock_fused_kernel(x_ref, w1_ref, w2_ref, w3_ref, b_ref, o_ref, *, out_width):
    """Fused forward: relu(relu(relu(x @ W1 + b1) @ W2 + b2) @ W3 + b3).

    Weights are bf16; activations are cast to bf16 at each MXU input; all
    accumulation is f32 (preferred_element_type); bias + ReLU epilogues in f32.
    The store emits only the true hidden width (out_width) of the last layer.
    """
    b = b_ref[...]                                   # (3, Hp) f32, loaded once

    # Layer 1 (concat already folded into W1 / x in the wrapper).
    h = jnp.dot(x_ref[...].astype(jnp.bfloat16), w1_ref[...],
                preferred_element_type=jnp.float32)
    h = jnp.maximum(h + b[0:1, :], 0.0)

    # Layer 2
    h = jnp.dot(h.astype(jnp.bfloat16), w2_ref[...],
                preferred_element_type=jnp.float32)
    h = jnp.maximum(h + b[1:2, :], 0.0)

    # Layer 3
    h = jnp.dot(h.astype(jnp.bfloat16), w3_ref[...],
                preferred_element_type=jnp.float32)
    h = jnp.maximum(h + b[2:3, :], 0.0)

    # True-width store (no-op slice when out_width == padded width).
    o_ref[...] = h[:, :out_width].astype(o_ref.dtype)


def prepare_sblock_params(params):
    """One-time (module-init analogue) repack of the Linear parameters:
      - keep W1 merged over the [action|state] rows (concat folded into one matmul),
      - zero-pad the hidden (lane) dimension up to a multiple of 128,
      - cast weights to bfloat16 (MXU-native operands; f32 accumulation in-kernel),
      - pack the f32 biases into a single (n_layers, hidden_pad) array.
    Zero padding is exact: padded weight rows/cols and biases are 0, relu(0)=0.
    """
    (w1, b1), (w2, b2), (w3, b3) = params
    in_dim, hidden = w1.shape
    Hp = _round_up(hidden, LANE)

    def pad_cast(w, rows, cols):
        out = jnp.zeros((rows, cols), jnp.float32)
        out = out.at[: w.shape[0], : w.shape[1]].set(w)
        return out.astype(jnp.bfloat16)

    w1p = pad_cast(w1, in_dim, Hp)   # merged [action|state] weight
    w2p = pad_cast(w2, Hp, Hp)
    w3p = pad_cast(w3, Hp, Hp)

    bpack = jnp.zeros((3, Hp), jnp.float32)
    bpack = bpack.at[0, :hidden].set(b1)
    bpack = bpack.at[1, :hidden].set(b2)
    bpack = bpack.at[2, :hidden].set(b3)
    return (w1p, w2p, w3p, bpack)


@functools.partial(jax.jit, static_argnames=("hidden",))
def sblock_forward(action, state, w1, w2, w3, bpack, *, hidden):
    """SBlock.forward as a single Pallas call (under jit: one executable)."""
    B, A = action.shape
    _, S = state.shape
    in_dim = A + S
    Hp = w2.shape[0]
    assert w1.shape == (in_dim, Hp)

    # Fold the feature-dim concat into the single layer-1 matmul input.
    x = jnp.concatenate([action, state], axis=1)          # (B, A+S), free XLA fusion

    TB, Bp, n_tiles = _batch_tiling(B, min_tiles=_tensorcores_per_chip())
    if Bp != B:
        x = jnp.pad(x, ((0, Bp - B), (0, 0)))              # at most TB-1 padded rows

    # Explicit scoped-VMEM budget: resident (double-buffered) bf16 weights +
    # in/out activation tiles + f32 intermediate headroom; floor 32 MiB, cap
    # below v7x's 64 MiB physical.
    weight_bytes = (w1.size + w2.size + w3.size) * w1.dtype.itemsize \
        + bpack.size * bpack.dtype.itemsize
    tile_bytes = 2 * TB * (in_dim + hidden) * 4
    scratch_bytes = 6 * TB * Hp * 4
    vmem_limit = int(min(48 << 20,
                         max(32 << 20, 2 * weight_bytes + tile_bytes + scratch_bytes)))

    out = pl.pallas_call(
        functools.partial(_sblock_fused_kernel, out_width=hidden),
        out_shape=jax.ShapeDtypeStruct((Bp, hidden), jnp.float32),
        grid=(n_tiles,),
        in_specs=[
            pl.BlockSpec((TB, in_dim), lambda i: (i, 0)),   # [action|state] tile
            pl.BlockSpec((in_dim, Hp), lambda i: (0, 0)),   # W1 (resident, bf16)
            pl.BlockSpec((Hp, Hp), lambda i: (0, 0)),       # W2 (resident, bf16)
            pl.BlockSpec((Hp, Hp), lambda i: (0, 0)),       # W3 (resident, bf16)
            pl.BlockSpec((3, Hp), lambda i: (0, 0)),        # packed f32 biases
        ],
        out_specs=pl.BlockSpec((TB, hidden), lambda i: (i, 0)),
        compiler_params=pltpu.CompilerParams(
            dimension_semantics=("parallel",),              # shards batch across TCs
            vmem_limit_bytes=vmem_limit),
    )(x, w1, w2, w3, bpack)

    return out if Bp == B else out[:B]


def make_params(key, in_dim, hidden, n_layers):
    """Deterministic synthetic parameters (shapes follow the assumed config)."""
    params = []
    d_in = in_dim
    for _ in range(n_layers):
        key, kw, kb = jax.random.split(key, 3)
        scale = 1.0 / jnp.sqrt(jnp.float32(d_in))
        w = jax.random.uniform(kw, (d_in, hidden), jnp.float32, -scale, scale)
        b = jax.random.uniform(kb, (hidden,), jnp.float32, -scale, scale)
        params.append((w, b))
        d_in = hidden
    return params


if __name__ == "__main__":
    key = jax.random.PRNGKey(0)
    k_act, k_state, k_par = jax.random.split(key, 3)

    batch = 8
    action_dim = 4
    state_dim = 12
    hidden = 32
    n_layers = 3

    action = jax.random.normal(k_act, (batch, action_dim), jnp.float32)
    state = jax.random.normal(k_state, (batch, state_dim), jnp.float32)
    params = make_params(k_par, action_dim + state_dim, hidden, n_layers)

    prepared = prepare_sblock_params(params)
    out = sblock_forward(action, state, *prepared, hidden=hidden)
    out = jax.block_until_ready(out)

    # Reference 1: exact f32 math of the original (concat -> Linear -> ReLU) path.
    ref = jnp.concatenate([action, state], axis=1)
    for (w, b) in params:
        ref = jnp.maximum(ref @ w + b, 0.0)

    # Reference 2: same math with the kernel's bf16 operand quantization
    # (f32 accumulation), to validate the kernel path tightly.
    ref_q = jnp.concatenate([action, state], axis=1)
    for (w, b) in params:
        ref_q = jnp.maximum(
            jnp.dot(ref_q.astype(jnp.bfloat16), w.astype(jnp.bfloat16),
                    preferred_element_type=jnp.float32) + b, 0.0)

    assert out.shape == (batch, hidden)
    assert jnp.allclose(out, ref_q, atol=1e-3, rtol=1e-3), "mismatch vs bf16-quantized reference"
    assert jnp.allclose(out, ref, atol=5e-2, rtol=5e-2), "mismatch vs f32 module reference"

    print("KERNEL_OK")
</pallas_src>

<mosaic_0001>
module attributes {stable_mosaic.version = 11 : i64} {
  func.func @_sblock_fused_kernel(%arg0: i32, %arg1: memref<8x16xf32, #tpu.memory_space<vmem>>, %arg2: memref<16x128xbf16, #tpu.memory_space<vmem>>, %arg3: memref<128x128xbf16, #tpu.memory_space<vmem>>, %arg4: memref<128x128xbf16, #tpu.memory_space<vmem>>, %arg5: memref<3x128xf32, #tpu.memory_space<vmem>>, %arg6: memref<8x32xf32, #tpu.memory_space<vmem>>) attributes {dimension_semantics = [#tpu.dimension_semantics<parallel>], iteration_bounds = array<i64: 1>, scalar_prefetch = 0 : i64, scratch_operands = 0 : i64, tpu.core_type = #tpu.core_type<tc>, window_params = [{transform_indices = @transform_0, window_bounds = array<i64: 8, 16>}, {pipeline_mode = #tpu.pipeline_mode<synchronous>, transform_indices = @transform_1, window_bounds = array<i64: 16, 128>}, {pipeline_mode = #tpu.pipeline_mode<synchronous>, transform_indices = @transform_2, window_bounds = array<i64: 128, 128>}, {pipeline_mode = #tpu.pipeline_mode<synchronous>, transform_indices = @transform_3, window_bounds = array<i64: 128, 128>}, {pipeline_mode = #tpu.pipeline_mode<synchronous>, transform_indices = @transform_4, window_bounds = array<i64: 3, 128>}, {transform_indices = @transform_5, window_bounds = array<i64: 8, 32>}]} {
    %c0 = arith.constant 0 : index
    %c0_0 = arith.constant 0 : index
    %0 = vector.load %arg5[%c0, %c0_0] : memref<3x128xf32, #tpu.memory_space<vmem>>, vector<3x128xf32>
    %c0_1 = arith.constant 0 : index
    %c0_2 = arith.constant 0 : index
    %1 = vector.load %arg1[%c0_1, %c0_2] : memref<8x16xf32, #tpu.memory_space<vmem>>, vector<8x16xf32>
    %2 = arith.truncf %1 : vector<8x16xf32> to vector<8x16xbf16>
    %c0_3 = arith.constant 0 : index
    %c0_4 = arith.constant 0 : index
    %3 = vector.load %arg2[%c0_3, %c0_4] : memref<16x128xbf16, #tpu.memory_space<vmem>>, vector<16x128xbf16>
    %cst = arith.constant dense<0.000000e+00> : vector<8x128xf32>
    %4 = tpu.matmul %2, %3, %cst {dimension_numbers = #tpu.dot_dimension_numbers<[1], [0], [0], [1], [0, 0, 1, 1], [], []>} : vector<8x16xbf16>, vector<16x128xbf16>, vector<8x128xf32> -> vector<8x128xf32>
    %5 = vector.extract_strided_slice %0 {offsets = [0, 0], sizes = [1, 128], strides = [1, 1]} : vector<3x128xf32> to vector<1x128xf32>
    %6 = vector.broadcast %5 : vector<1x128xf32> to vector<8x128xf32>
    %7 = arith.addf %4, %6 : vector<8x128xf32>
    %cst_5 = arith.constant 0.000000e+00 : f32
    %8 = vector.broadcast %cst_5 : f32 to vector<8x128xf32>
    %9 = arith.maximumf %7, %8 : vector<8x128xf32>
    %10 = arith.truncf %9 : vector<8x128xf32> to vector<8x128xbf16>
    %c0_6 = arith.constant 0 : index
    %c0_7 = arith.constant 0 : index
    %11 = vector.load %arg3[%c0_6, %c0_7] : memref<128x128xbf16, #tpu.memory_space<vmem>>, vector<128x128xbf16>
    %cst_8 = arith.constant dense<0.000000e+00> : vector<8x128xf32>
    %12 = tpu.matmul %10, %11, %cst_8 {dimension_numbers = #tpu.dot_dimension_numbers<[1], [0], [0], [1], [0, 0, 1, 1], [], []>} : vector<8x128xbf16>, vector<128x128xbf16>, vector<8x128xf32> -> vector<8x128xf32>
    %13 = vector.extract_strided_slice %0 {offsets = [1, 0], sizes = [1, 128], strides = [1, 1]} : vector<3x128xf32> to vector<1x128xf32>
    %14 = vector.broadcast %13 : vector<1x128xf32> to vector<8x128xf32>
    %15 = arith.addf %12, %14 : vector<8x128xf32>
    %cst_9 = arith.constant 0.000000e+00 : f32
    %16 = vector.broadcast %cst_9 : f32 to vector<8x128xf32>
    %17 = arith.maximumf %15, %16 : vector<8x128xf32>
    %18 = arith.truncf %17 : vector<8x128xf32> to vector<8x128xbf16>
    %c0_10 = arith.constant 0 : index
    %c0_11 = arith.constant 0 : index
    %19 = vector.load %arg4[%c0_10, %c0_11] : memref<128x128xbf16, #tpu.memory_space<vmem>>, vector<128x128xbf16>
    %cst_12 = arith.constant dense<0.000000e+00> : vector<8x128xf32>
    %20 = tpu.matmul %18, %19, %cst_12 {dimension_numbers = #tpu.dot_dimension_numbers<[1], [0], [0], [1], [0, 0, 1, 1], [], []>} : vector<8x128xbf16>, vector<128x128xbf16>, vector<8x128xf32> -> vector<8x128xf32>
    %21 = vector.extract_strided_slice %0 {offsets = [2, 0], sizes = [1, 128], strides = [1, 1]} : vector<3x128xf32> to vector<1x128xf32>
    %22 = vector.broadcast %21 : vector<1x128xf32> to vector<8x128xf32>
    %23 = arith.addf %20, %22 : vector<8x128xf32>
    %cst_13 = arith.constant 0.000000e+00 : f32
    %24 = vector.broadcast %cst_13 : f32 to vector<8x128xf32>
    %25 = arith.maximumf %23, %24 : vector<8x128xf32>
    %26 = vector.extract_strided_slice %25 {offsets = [0, 0], sizes = [8, 32], strides = [1, 1]} : vector<8x128xf32> to vector<8x32xf32>
    %c0_14 = arith.constant 0 : index
    %c0_15 = arith.constant 0 : index
    %27 = vector.load %arg6[%c0_14, %c0_15] : memref<8x32xf32, #tpu.memory_space<vmem>>, vector<8x32xf32>
    tpu.vector_store %arg6[%c0_14, %c0_15], %26 {strides = array<i32>} : memref<8x32xf32, #tpu.memory_space<vmem>>, vector<8x32xf32>,
    return
  }
  func.func @transform_0(%arg0: i32) -> (i32, i32) {
    %c0_i32 = arith.constant 0 : i32
    %c0_i32_0 = arith.constant 0 : i32
    return %arg0, %c0_i32 : i32, i32
  }
  func.func @transform_1(%arg0: i32) -> (i32, i32) {
    %c0_i32 = arith.constant 0 : i32
    %c0_i32_0 = arith.constant 0 : i32
    %c0_i32_1 = arith.constant 0 : i32
    return %c0_i32, %c0_i32_0 : i32, i32
  }
  func.func @transform_2(%arg0: i32) -> (i32, i32) {
    %c0_i32 = arith.constant 0 : i32
    %c0_i32_0 = arith.constant 0 : i32
    %c0_i32_1 = arith.constant 0 : i32
    return %c0_i32, %c0_i32_0 : i32, i32
  }
  func.func @transform_3(%arg0: i32) -> (i32, i32) {
    %c0_i32 = arith.constant 0 : i32
    %c0_i32_0 = arith.constant 0 : i32
    %c0_i32_1 = arith.constant 0 : i32
    return %c0_i32, %c0_i32_0 : i32, i32
  }
  func.func @transform_4(%arg0: i32) -> (i32, i32) {
    %c0_i32 = arith.constant 0 : i32
    %c0_i32_0 = arith.constant 0 : i32
    %c0_i32_1 = arith.constant 0 : i32
    return %c0_i32, %c0_i32_0 : i32, i32
  }
  func.func @transform_5(%arg0: i32) -> (i32, i32) {
    %c0_i32 = arith.constant 0 : i32
    %c0_i32_0 = arith.constant 0 : i32
    return %arg0, %c0_i32 : i32, i32
  }
}

</mosaic_0001>

<llo_original>
// kernel: sblock_forward.1
$region0: #{sblock_forward.1}
  #allocation0 [shape = 'u32[]', space=smem, size = 0x4, offset = 0x4, fixed_abs, tag = 'smem constant byte address 0x4 - core index']
  #allocation1 [shape = 'u32[144,128]{1,0:T(1,128)}', space=vmem, size = 0x12000, scoped, tag = 'internal scratch']
  %s0 = inlined_call_operand.vmem [shape: f32[8,16], index: 0, kind: input, shape index: {}]
  %s1 = inlined_call_operand.vmem [shape: bf16[16,128], index: 1, kind: input, shape index: {}]
  %s2 = inlined_call_operand.hbm [shape: bf16[128,128], index: 2, kind: input, shape index: {}]
  %s3 = inlined_call_operand.hbm [shape: bf16[128,128], index: 3, kind: input, shape index: {}]
  %s4 = inlined_call_operand.vmem [shape: f32[3,128], index: 4, kind: input, shape index: {}]
  %s5 = inlined_call_operand.hbm [shape: f32[8,32], index: 5, kind: output, shape index: {}]
  %s6 = sld [smem:[#allocation0]]
  $region38: #{sblock_forward.1} parent=0
    _
  %s8 = ssub.s32 1, %s6
  %s9 = scalar_select 0, %s8, %s6
  $region1: #{sblock_forward.1} parent=0
    #allocation2 [shape = 'u8[32768]{0}', space=vmem, size = 0x8000, scoped, tag = 'input window, operand 2, single buffered']
    #allocation3 [shape = 's32[1]{0}', space=sflag, size = 0x4, scoped, tag = 'scoped memory for sblock_forward.1']
    #allocation4 [shape = 's32[1]{0}', space=sflag, size = 0x4, scoped, tag = 'scoped memory for sblock_forward.1']
    #allocation5 [shape = 'u8[32768]{0}', space=vmem, size = 0x8000, scoped, tag = 'input window, operand 3, single buffered']
    #allocation6 [shape = 's32[1]{0}', space=sflag, size = 0x4, scoped, tag = 'scoped memory for sblock_forward.1']
    #allocation7 [shape = 'u8[4096]{0}', space=vmem, size = 0x1000, scoped, tag = 'output window, operand 0, single buffered']
    %10 = vsyncpa [#allocation3], 0
    %11 = vsyncpa [#allocation6], 0
    %12 = vsyncpa [#allocation4], 0
    // Predicated region
    $region2: #{sblock_forward.1} parent=1 // pred_check
      _
    $region3: #{sblock_forward.1} parent=1 // pred_check_branch
      %14 = sbr.rel (0) target = $region5
    $region4: #{sblock_forward.1} parent=1 // pred_region
      _
    $region5: #{sblock_forward.1} parent=1 // pred_fallthru
      _
    // Predicated region
    $region6: #{sblock_forward.1} parent=1 // pred_check
      _
    $region7: #{sblock_forward.1} parent=1 // pred_check_branch
      %16 = sbr.rel (0) target = $region9
    $region8: #{sblock_forward.1} parent=1 // pred_region
      _
    $region9: #{sblock_forward.1} parent=1 // pred_fallthru
      _
    // Predicated region
    $region10: #{sblock_forward.1} parent=1 // pred_check
      _
    $region11: #{sblock_forward.1} parent=1 // pred_check_branch
      %18 = sbr.rel (0) target = $region13
    $region12: #{sblock_forward.1} parent=1 // pred_region
      %s20 = ssub.s32 1024, 1024
      %21 = vsyncadd [#allocation3], %s20
      %s22 = sshll.u32 [#allocation2], 4
      %s23 = int_to_ptr.vmem [resolvable:$true] %s22
      %28 = dma.hbm_to_vmem [thread:$0]  %s2, 1024, %s23, [#allocation3], 64, 64, 4
    $region13: #{sblock_forward.1} parent=1 // pred_fallthru
      _
    // Predicated region
    $region14: #{sblock_forward.1} parent=1 // pred_check
      _
    $region15: #{sblock_forward.1} parent=1 // pred_check_branch
      %30 = sbr.rel (0) target = $region17
    $region16: #{sblock_forward.1} parent=1 // pred_region
      %s32 = ssub.s32 1024, 1024
      %33 = vsyncadd [#allocation6], %s32
      %s34 = sshll.u32 [#allocation5], 4
      %s35 = int_to_ptr.vmem [resolvable:$true] %s34
      %40 = dma.hbm_to_vmem [thread:$0]  %s3, 1024, %s35, [#allocation6], 64, 64, 4
    $region17: #{sblock_forward.1} parent=1 // pred_fallthru
      _
    // Predicated region
    $region18: #{sblock_forward.1} parent=1 // pred_check
      _
    $region19: #{sblock_forward.1} parent=1 // pred_check_branch
      %42 = sbr.rel (0) target = $region21
    $region20: #{sblock_forward.1} parent=1 // pred_region
      _
    $region21: #{sblock_forward.1} parent=1 // pred_fallthru
      _
    // Predicated region
    $region22: #{sblock_forward.1} parent=1 // pred_check
      _
    $region23: #{sblock_forward.1} parent=1 // pred_check_branch
      %44 = sbr.rel (0) target = $region25
    $region24: #{sblock_forward.1} parent=1 // pred_region
      %45 = dma.done [#allocation3], 1024
    $region25: #{sblock_forward.1} parent=1 // pred_fallthru
      _
    // Predicated region
    $region26: #{sblock_forward.1} parent=1 // pred_check
      _
    $region27: #{sblock_forward.1} parent=1 // pred_check_branch
      %47 = sbr.rel (0) target = $region29
    $region28: #{sblock_forward.1} parent=1 // pred_region
      %48 = dma.done [#allocation6], 1024
    $region29: #{sblock_forward.1} parent=1 // pred_fallthru
      _
    %v50 = vld [vmem:[%s4] sm:$0x7]
    %v51 = vld [vmem:[%s0] sm:$0xff]
    %v52 = vpack.c.bf16 %v51, %v51
    %v53 = vld [vmem:[%s1] sm:$0xf]
    %v54 = vld [vmem:[%s1 + $0x4] sm:$0xf]
    %v55 = vlaneseq
    %v56 = vshrl.u32 %v55, 7
    %v57 = vsub.s32 0, %v56
    %v58 = vrot.slane %v50, %v57
    %v61 = vunpack.c.l.b16 %v53
    %v62 = vunpack.c.l.b16 %v54
    %v63 = vpack.c.b16 %v62, %v61
    %vm65 = vcmask 130048
    %v67 = vsel %vm65, %v52, 0
    %69 = vmatprep.subr.bf16.mxu0 0
    %70 = vmatpush1.bf16.msra.mxu0 0
    %71 = vmatprep.subr.bf16.mxu0 0
    %72 = vmatpush1.bf16.msra.mxu0 0
    %73 = vmatprep.subr.bf16.mxu0 0
    %74 = vmatpush1.bf16.msra.mxu0 0
    %75 = vmatprep.subr.bf16.mxu0 0
    %76 = vmatpush1.bf16.msra.mxu0 0
    %77 = vmatprep.subr.bf16.mxu0 0
    %78 = vmatpush1.bf16.msra.mxu0 0
    %79 = vmatprep.subr.bf16.mxu0 0
    %80 = vmatpush1.bf16.msra.mxu0 0
    %81 = vmatprep.subr.bf16.mxu0 0
    %82 = vmatpush1.bf16.msra.mxu0 0
    %83 = vmatprep.subr.bf16.mxu0 0
    %84 = vmatpush1.bf16.msra.mxu0 %v63
    %85 = vmatprep.subr.bf16.mxu0 0
    %86 = vmatpush2.bf16.msra.mxu0 0
    %87 = vmatprep.subr.bf16.mxu0 0
    %88 = vmatpush2.bf16.msra.mxu0 0
    %89 = vmatprep.subr.bf16.mxu0 0
    %90 = vmatpush2.bf16.msra.mxu0 0
    %91 = vmatprep.subr.bf16.mxu0 0
    %92 = vmatpush2.bf16.msra.mxu0 0
    %93 = vmatprep.subr.bf16.mxu0 0
    %94 = vmatpush2.bf16.msra.mxu0 0
    %95 = vmatprep.subr.bf16.mxu0 0
    %96 = vmatpush2.bf16.msra.mxu0 0
    %97 = vmatprep.subr.bf16.mxu0 0
    %98 = vmatpush2.bf16.msra.mxu0 0
    %99 = vmatprep.subr.bf16.mxu0 0
    %100 = vmatpush2.bf16.msra.mxu0 0
    %101 = vmatprep.mubr.bf16.mxu0 0
    %102 = vmatmul.mubr.bf16.gmra.mxu0 %v67
    %v103 = vpop.f32.mrf.mxu0
    %v104 = vadd.f32 %v58, %v103
    %v105 = vpop.f32.mrf.mxu0
    %v106 = vpop.f32.mrf.mxu0
    %v107 = vpop.f32.mrf.mxu0
    %108 = vdwg.mxu0
    %v109 = vmax.f32 %v104, 0.0
    %v110 = vpack.c.bf16 %v109, %v109
    %v111 = vld [vmem:[#allocation2] sm:$0xf]
    %v112 = vld [vmem:[#allocation2 + $0x4] sm:$0xf]
    %v113 = vld [vmem:[#allocation2 + $0x8] sm:$0xf]
    %v114 = vld [vmem:[#allocation2 + $0xc] sm:$0xf]
    %v115 = vld [vmem:[#allocation2 + $0x10] sm:$0xf]
    %v116 = vld [vmem:[#allocation2 + $0x14] sm:$0xf]
    %v117 = vld [vmem:[#allocation2 + $0x18] sm:$0xf]
    %v118 = vld [vmem:[#allocation2 + $0x1c] sm:$0xf]
    %v119 = vld [vmem:[#allocation2 + $0x20] sm:$0xf]
    %v120 = vld [vmem:[#allocation2 + $0x24] sm:$0xf]
    %v121 = vld [vmem:[#allocation2 + $0x28] sm:$0xf]
    %v122 = vld [vmem:[#allocation2 + $0x2c] sm:$0xf]
    %v123 = vld [vmem:[#allocation2 + $0x30] sm:$0xf]
    %v124 = vld [vmem:[#allocation2 + $0x34] sm:$0xf]
    %v125 = vld [vmem:[#allocation2 + $0x38] sm:$0xf]
    %v126 = vld [vmem:[#allocation2 + $0x3c] sm:$0xf]
    %v127 = vlaneseq
    %v128 = vshrl.u32 %v127, 7
    %v129 = vsub.s32 1, %v128
    %v130 = vrot.slane %v50, %v129
    %v147 = vunpack.c.l.b16 %v111
    %v148 = vunpack.c.l.b16 %v112
    %v149 = vunpack.c.l.b16 %v113
    %v150 = vunpack.c.l.b16 %v114
    %v151 = vunpack.c.l.b16 %v115
    %v152 = vunpack.c.l.b16 %v116
    %v153 = vunpack.c.l.b16 %v117
    %v154 = vunpack.c.l.b16 %v118
    %v155 = vunpack.c.l.b16 %v119
    %v156 = vunpack.c.l.b16 %v120
    %v157 = vunpack.c.l.b16 %v121
    %v158 = vunpack.c.l.b16 %v122
    %v159 = vunpack.c.l.b16 %v123
    %v160 = vunpack.c.l.b16 %v124
    %v161 = vunpack.c.l.b16 %v125
    %v162 = vunpack.c.l.b16 %v126
    %v163 = vpack.c.b16 %v148, %v147
    %v164 = vpack.c.b16 %v150, %v149
    %v165 = vpack.c.b16 %v152, %v151
    %v166 = vpack.c.b16 %v154, %v153
    %v167 = vpack.c.b16 %v156, %v155
    %v168 = vpack.c.b16 %v158, %v157
    %v169 = vpack.c.b16 %v160, %v159
    %v170 = vpack.c.b16 %v162, %v161
    %179 = vmatprep.subr.bf16.mxu0 0
    %180 = vmatpush1.bf16.msra.mxu0 %v170
    %181 = vmatprep.subr.bf16.mxu0 0
    %182 = vmatpush1.bf16.msra.mxu0 %v169
    %183 = vmatprep.subr.bf16.mxu0 0
    %184 = vmatpush1.bf16.msra.mxu0 %v168
    %185 = vmatprep.subr.bf16.mxu0 0
    %186 = vmatpush1.bf16.msra.mxu0 %v167
    %187 = vmatprep.subr.bf16.mxu0 0
    %188 = vmatpush1.bf16.msra.mxu0 %v166
    %189 = vmatprep.subr.bf16.mxu0 0
    %190 = vmatpush1.bf16.msra.mxu0 %v165
    %191 = vmatprep.subr.bf16.mxu0 0
    %192 = vmatpush1.bf16.msra.mxu0 %v164
    %193 = vmatprep.subr.bf16.mxu0 0
    %194 = vmatpush1.bf16.msra.mxu0 %v163
    %195 = vmatprep.subr.bf16.mxu0 0
    %196 = vmatpush2.bf16.msra.mxu0 0
    %197 = vmatprep.subr.bf16.mxu0 0
    %198 = vmatpush2.bf16.msra.mxu0 0
    %199 = vmatprep.subr.bf16.mxu0 0
    %200 = vmatpush2.bf16.msra.mxu0 0
    %201 = vmatprep.subr.bf16.mxu0 0
    %202 = vmatpush2.bf16.msra.mxu0 0
    %203 = vmatprep.subr.bf16.mxu0 0
    %204 = vmatpush2.bf16.msra.mxu0 0
    %205 = vmatprep.subr.bf16.mxu0 0
    %206 = vmatpush2.bf16.msra.mxu0 0
    %207 = vmatprep.subr.bf16.mxu0 0
    %208 = vmatpush2.bf16.msra.mxu0 0
    %209 = vmatprep.subr.bf16.mxu0 0
    %210 = vmatpush2.bf16.msra.mxu0 0
    %211 = vmatprep.mubr.bf16.mxu0 0
    %212 = vmatmul.mubr.bf16.gmra.mxu0 %v110
    %v213 = vpop.f32.mrf.mxu0
    %v214 = vadd.f32 %v130, %v213
    %v215 = vpop.f32.mrf.mxu0
    %v216 = vpop.f32.mrf.mxu0
    %v217 = vpop.f32.mrf.mxu0
    %218 = vdwg.mxu0
    %v219 = vmax.f32 %v214, 0.0
    %v220 = vpack.c.bf16 %v219, %v219
    %v221 = vld [vmem:[#allocation5] sm:$0xf]
    %v222 = vld [vmem:[#allocation5 + $0x4] sm:$0xf]
    %v223 = vld [vmem:[#allocation5 + $0x8] sm:$0xf]
    %v224 = vld [vmem:[#allocation5 + $0xc] sm:$0xf]
    %v225 = vld [vmem:[#allocation5 + $0x10] sm:$0xf]
    %v226 = vld [vmem:[#allocation5 + $0x14] sm:$0xf]
    %v227 = vld [vmem:[#allocation5 + $0x18] sm:$0xf]
    %v228 = vld [vmem:[#allocation5 + $0x1c] sm:$0xf]
    %v229 = vld [vmem:[#allocation5 + $0x20] sm:$0xf]
    %v230 = vld [vmem:[#allocation5 + $0x24] sm:$0xf]
    %v231 = vld [vmem:[#allocation5 + $0x28] sm:$0xf]
    %v232 = vld [vmem:[#allocation5 + $0x2c] sm:$0xf]
    %v233 = vld [vmem:[#allocation5 + $0x30] sm:$0xf]
    %v234 = vld [vmem:[#allocation5 + $0x34] sm:$0xf]
    %v235 = vld [vmem:[#allocation5 + $0x38] sm:$0xf]
    %v236 = vld [vmem:[#allocation5 + $0x3c] sm:$0xf]
    %v237 = vlaneseq
    %v238 = vshrl.u32 %v237, 7
    %v239 = vsub.s32 2, %v238
    %v240 = vrot.slane %v50, %v239
    %v257 = vunpack.c.l.b16 %v221
    %v258 = vunpack.c.l.b16 %v222
    %v259 = vunpack.c.l.b16 %v223
    %v260 = vunpack.c.l.b16 %v224
    %v261 = vunpack.c.l.b16 %v225
    %v262 = vunpack.c.l.b16 %v226
    %v263 = vunpack.c.l.b16 %v227
    %v264 = vunpack.c.l.b16 %v228
    %v265 = vunpack.c.l.b16 %v229
    %v266 = vunpack.c.l.b16 %v230
    %v267 = vunpack.c.l.b16 %v231
    %v268 = vunpack.c.l.b16 %v232
    %v269 = vunpack.c.l.b16 %v233
    %v270 = vunpack.c.l.b16 %v234
    %v271 = vunpack.c.l.b16 %v235
    %v272 = vunpack.c.l.b16 %v236
    %v273 = vpack.c.b16 %v258, %v257
    %v274 = vpack.c.b16 %v260, %v259
    %v275 = vpack.c.b16 %v262, %v261
    %v276 = vpack.c.b16 %v264, %v263
    %v277 = vpack.c.b16 %v266, %v265
    %v278 = vpack.c.b16 %v268, %v267
    %v279 = vpack.c.b16 %v270, %v269
    %v280 = vpack.c.b16 %v272, %v271
    %289 = vmatprep.subr.bf16.mxu0 0
    %290 = vmatpush1.bf16.msra.mxu0 %v280
    %291 = vmatprep.subr.bf16.mxu0 0
    %292 = vmatpush1.bf16.msra.mxu0 %v279
    %293 = vmatprep.subr.bf16.mxu0 0
    %294 = vmatpush1.bf16.msra.mxu0 %v278
    %295 = vmatprep.subr.bf16.mxu0 0
    %296 = vmatpush1.bf16.msra.mxu0 %v277
    %297 = vmatprep.subr.bf16.mxu0 0
    %298 = vmatpush1.bf16.msra.mxu0 %v276
    %299 = vmatprep.subr.bf16.mxu0 0
    %300 = vmatpush1.bf16.msra.mxu0 %v275
    %301 = vmatprep.subr.bf16.mxu0 0
    %302 = vmatpush1.bf16.msra.mxu0 %v274
    %303 = vmatprep.subr.bf16.mxu0 0
    %304 = vmatpush1.bf16.msra.mxu0 %v273
    %305 = vmatprep.subr.bf16.mxu0 0
    %306 = vmatpush2.bf16.msra.mxu0 0
    %307 = vmatprep.subr.bf16.mxu0 0
    %308 = vmatpush2.bf16.msra.mxu0 0
    %309 = vmatprep.subr.bf16.mxu0 0
    %310 = vmatpush2.bf16.msra.mxu0 0
    %311 = vmatprep.subr.bf16.mxu0 0
    %312 = vmatpush2.bf16.msra.mxu0 0
    %313 = vmatprep.subr.bf16.mxu0 0
    %314 = vmatpush2.bf16.msra.mxu0 0
    %315 = vmatprep.subr.bf16.mxu0 0
    %316 = vmatpush2.bf16.msra.mxu0 0
    %317 = vmatprep.subr.bf16.mxu0 0
    %318 = vmatpush2.bf16.msra.mxu0 0
    %319 = vmatprep.subr.bf16.mxu0 0
    %320 = vmatpush2.bf16.msra.mxu0 0
    %321 = vmatprep.mubr.bf16.mxu0 0
    %322 = vmatmul.mubr.bf16.gmra.mxu0 %v220
    %v323 = vpop.f32.mrf.mxu0
    %v324 = vadd.f32 %v240, %v323
    %v325 = vpop.f32.mrf.mxu0
    %v326 = vpop.f32.mrf.mxu0
    %v327 = vpop.f32.mrf.mxu0
    %328 = vdwg.mxu0
    %v329 = vmax.f32 %v324, 0.0
    %vm330 = vcmask 261120
    %331 = vst.msk [vmem:[#allocation7] sm:$0xff] %vm330, %v329
    // Predicated region
    $region30: #{sblock_forward.1} parent=1 // pred_check
      _
    $region31: #{sblock_forward.1} parent=1 // pred_check_branch
      %333 = sbr.rel (0) target = $region33
    $region32: #{sblock_forward.1} parent=1 // pred_region
      %s335 = ssub.s32 128, 128
      %336 = vsyncadd [#allocation4], %s335
      %s338 = sshll.u32 [#allocation7], 4
      %s339 = int_to_ptr.vmem [resolvable:$true] %s338
      %341 = dma.vmem_to_hbm [thread:$0]  %s339, 128, %s5, [#allocation4]
    $region33: #{sblock_forward.1} parent=1 // pred_fallthru
      _
    // Predicated region
    $region34: #{sblock_forward.1} parent=1 // pred_check
      _
    $region35: #{sblock_forward.1} parent=1 // pred_check_branch
      %343 = sbr.rel (0) target = $region37
    $region36: #{sblock_forward.1} parent=1 // pred_region
      %344 = dma.done [#allocation4], 128
    $region37: #{sblock_forward.1} parent=1 // pred_fallthru
      _
    %345 = vsyncpa [#allocation3], 1
    %346 = vsyncpa [#allocation6], 1
    %347 = vsyncpa [#allocation4], 1

</llo_original>
